<compile_context>
chip_gen: v7x
topology: tpu7x:2x2x1
jax: 0.10.0
libtpu: 0.0.40
codegen_flags: <defaults>
</compile_context>

<pallas_src>
import jax
import jax.numpy as jnp
from jax.experimental import pallas as pl
from jax.experimental.pallas import tpu as pltpu

TM_CAP = 512                       # row tile cap (2x the 256-wide MXU)
VMEM_BUDGET = 48 * 1024 * 1024     # conservative: fits v7x 64 MiB with headroom
VMEM_LIMIT_CAP = 56 * 1024 * 1024


def _round_up(x, m):
    return ((x + m - 1) // m) * m


def _tn_candidates(dout):
    """Full Dout first, then decreasing multiple-of-128 divisors of Dout."""
    cands = [dout]
    if dout % 128 == 0:
        for tn in range(dout - 128, 0, -128):
            if dout % tn == 0:
                cands.append(tn)
    return cands


def _footprint_bytes(tm, tn, din, r2, x_bytes, out_bytes):
    """VMEM footprint: double-buffered I/O tiles + in-kernel f32 temporaries."""
    return (2 * tm * din * x_bytes        # x row tiles (bf16)
            + 2 * din * tn * 2            # bf16 weight column tile(s)
            + 2 * tn * 4                  # f32 bias tile(s)
            + 2 * din * r2 * 2            # LoRA At (grid-invariant, tiny)
            + 2 * r2 * tn * 2             # LoRA Bt column tile(s)
            + 2 * tm * tn * out_bytes     # output tiles
            + tm * tn * 4                 # f32 accumulator temporary (y)
            + tm * r2 * 4)                # f32 LoRA mid temporary


def _choose_tiles(m, din, dout, r2, x_bytes, out_bytes):
    tm_cap = min(TM_CAP, _round_up(m, 8))
    for tn in _tn_candidates(dout):
        tm = tm_cap
        while True:
            if _footprint_bytes(tm, tn, din, r2, x_bytes, out_bytes) <= VMEM_BUDGET:
                return tm, tn
            if tm <= 8:
                break
            tm = max(8, tm // 2)
    return 8, _tn_candidates(dout)[-1]


def _lora_linear_kernel(x_ref, wt_ref, b_ref, at_ref, bt_ref, o_ref):
    """o = x @ Wt + bias + (x @ At) @ Bt  for one (col-tile, row-tile)."""
    x = x_ref[...]                                        # bf16 (cast in wrapper)
    y = jnp.dot(x, wt_ref[...], preferred_element_type=jnp.float32)
    y = y + b_ref[...]                                    # (1, tn) f32 broadcast
    mid = jnp.dot(x, at_ref[...], preferred_element_type=jnp.float32)
    y = y + jnp.dot(mid.astype(jnp.bfloat16), bt_ref[...],
                    preferred_element_type=jnp.float32)
    o_ref[...] = y.astype(o_ref.dtype)


def lora_linear_2d(x2d, wt, bias, at, bt, *, out_dtype=jnp.bfloat16):
    """Fused LoRA linear on a flattened (M, Din) activation matrix.

    wt:   (Din, Dout)  base weight, already transposed
    bias: (Dout,)
    at:   (Din, R)     LoRA down-projection (transposed)
    bt:   (R, Dout)    LoRA up-projection   (transposed)
    """
    M, Din = x2d.shape
    Dout = wt.shape[1]
    R2 = at.shape[1]

    # bf16 MXU compute operands; f32 accumulation happens inside the kernel.
    x_bf = x2d.astype(jnp.bfloat16)
    wt_bf = wt.astype(jnp.bfloat16)
    at_bf = at.astype(jnp.bfloat16)
    bt_bf = bt.astype(jnp.bfloat16)
    b2 = bias.astype(jnp.float32).reshape(1, Dout)

    out_bytes = jnp.dtype(out_dtype).itemsize
    tm, tn = _choose_tiles(M, Din, Dout, R2, x_bytes=2, out_bytes=out_bytes)
    ni = pl.cdiv(M, tm)
    nj = Dout // tn

    need = _footprint_bytes(tm, tn, Din, R2, 2, out_bytes)
    vmem_limit = int(min(max(int(need * 1.25), 16 << 20), VMEM_LIMIT_CAP))

    # Megacore: if the outer (Dout-tile) axis is odd and > 1, an even split is
    # impossible -> mark it "arbitrary" so the core split lands on the M axis.
    j_sem = "parallel" if (nj % 2 == 0) else "arbitrary"

    out = pl.pallas_call(
        _lora_linear_kernel,
        out_shape=jax.ShapeDtypeStruct((M, Dout), out_dtype),
        grid_spec=pltpu.PrefetchScalarGridSpec(
            num_scalar_prefetch=0,
            # Dout tiles outer, M tiles inner -> the weight column tile's block
            # index is constant along the inner axis, so Pallas fetches each
            # weight tile exactly once while x rows stream through.  With the
            # preferred tn = Dout this degenerates to a 1-D sweep over M.
            grid=(nj, ni),
            in_specs=[
                pl.BlockSpec((tm, Din), lambda j, i: (i, 0)),   # x row tile
                pl.BlockSpec((Din, tn), lambda j, i: (0, j)),   # Wt col tile
                pl.BlockSpec((1, tn),   lambda j, i: (0, j)),   # bias col tile
                pl.BlockSpec((Din, R2), lambda j, i: (0, 0)),   # At (invariant)
                pl.BlockSpec((R2, tn),  lambda j, i: (0, j)),   # Bt col tile
            ],
            out_specs=pl.BlockSpec((tm, tn), lambda j, i: (i, j)),
        ),
        compiler_params=pltpu.CompilerParams(
            dimension_semantics=(j_sem, "parallel"),
            vmem_limit_bytes=vmem_limit),
    )(x_bf, wt_bf, b2, at_bf, bt_bf)
    return out


# ----------------------------- module wrappers ------------------------------

def lora_qkv_forward(x_nhwc, qkv_w, qkv_b, a_q, b_q, a_v, b_v,
                     *, out_dtype=jnp.bfloat16):
    """_LoRA_qkv.forward  —  x: (B, H, W, C) -> (B, H, W, 3C).

    qkv_w: (3C, C) torch-layout weight; qkv_b: (3C,)
    a_q, a_v: (r, C);  b_q, b_v: (C, r)
    """
    B, H, W, C = x_nhwc.shape
    r = a_q.shape[0]
    x2d = x_nhwc.reshape(B * H * W, C)

    wt = qkv_w.T                                    # (C, 3C)
    # Fold both LoRA branches into one rank-2r adapter: B_q scatters into the
    # q columns [0:C], B_v into the v columns [2C:3C]; the k third stays zero.
    at = jnp.concatenate([a_q.T, a_v.T], axis=1)    # (C, 2r)
    bt = jnp.zeros((2 * r, 3 * C), jnp.float32)
    bt = bt.at[:r, :C].set(b_q.T.astype(jnp.float32))
    bt = bt.at[r:, 2 * C:].set(b_v.T.astype(jnp.float32))

    y2d = lora_linear_2d(x2d, wt, qkv_b, at, bt, out_dtype=out_dtype)
    return y2d.reshape(B, H, W, 3 * C)


def lora_proj_forward(x_bnc, p_w, p_b, a_w, b_w, *, out_dtype=jnp.bfloat16):
    """_LoRA_qkv_proj.forward  —  x: (B, N, Din) -> (B, N, Dout).

    p_w: (Dout, Din) torch-layout weight; p_b: (Dout,)
    a_w: (r, Din);  b_w: (Dout, r)
    """
    B, N, Din = x_bnc.shape
    Dout = p_w.shape[0]
    x2d = x_bnc.reshape(B * N, Din)
    y2d = lora_linear_2d(x2d, p_w.T, p_b, a_w.T, b_w.T, out_dtype=out_dtype)
    return y2d.reshape(B, N, Dout)


# --------------------------------- reference ---------------------------------

def ref_lora_qkv(x, qkv_w, qkv_b, a_q, b_q, a_v, b_v):
    qkv = x @ qkv_w.T + qkv_b
    new_q = (x @ a_q.T) @ b_q.T
    new_v = (x @ a_v.T) @ b_v.T
    C = x.shape[-1]
    qkv = qkv.at[..., :C].add(new_q)
    qkv = qkv.at[..., -C:].add(new_v)
    return qkv


def ref_lora_proj(x, p_w, p_b, a_w, b_w):
    return x @ p_w.T + p_b + (x @ a_w.T) @ b_w.T


# ----------------------------------- main ------------------------------------

if __name__ == "__main__":
    key = jax.random.PRNGKey(0)
    ks = list(jax.random.split(key, 16))

    # --- image-encoder block (one LoRA'd qkv layer) ---
    B, H, W, C = 2, 8, 8, 32
    r = 4
    x_enc = jax.random.normal(ks[0], (B, H, W, C), jnp.float32)
    qkv_w = 0.05 * jax.random.normal(ks[1], (3 * C, C), jnp.float32)
    qkv_b = 0.01 * jax.random.normal(ks[2], (3 * C,), jnp.float32)
    # NOTE: reset_parameters() zero-inits B; nonzero deterministic values are
    # used here so the LoRA path is actually exercised/verified.
    a_q = 0.1 * jax.random.normal(ks[3], (r, C), jnp.float32)
    b_q = 0.1 * jax.random.normal(ks[4], (C, r), jnp.float32)
    a_v = 0.1 * jax.random.normal(ks[5], (r, C), jnp.float32)
    b_v = 0.1 * jax.random.normal(ks[6], (C, r), jnp.float32)

    out_qkv = jax.block_until_ready(
        lora_qkv_forward(x_enc, qkv_w, qkv_b, a_q, b_q, a_v, b_v))
    ref_qkv = ref_lora_qkv(x_enc, qkv_w, qkv_b, a_q, b_q, a_v, b_v)
    assert out_qkv.shape == (B, H, W, 3 * C)
    # bf16 operands + bf16 output, f32 accumulation -> loosened tolerance.
    assert jnp.allclose(out_qkv.astype(jnp.float32), ref_qkv,
                        atol=5e-2, rtol=5e-2)

    # --- mask-decoder block (one LoRA'd q_proj layer) ---
    Bt_, N, Din, Dout = 2, 8, 32, 32
    x_dec = jax.random.normal(ks[7], (Bt_, N, Din), jnp.float32)
    p_w = 0.05 * jax.random.normal(ks[8], (Dout, Din), jnp.float32)
    p_b = 0.01 * jax.random.normal(ks[9], (Dout,), jnp.float32)
    a_w = 0.1 * jax.random.normal(ks[10], (r, Din), jnp.float32)
    b_w = 0.1 * jax.random.normal(ks[11], (Dout, r), jnp.float32)

    out_proj = jax.block_until_ready(
        lora_proj_forward(x_dec, p_w, p_b, a_w, b_w))
    ref_proj = ref_lora_proj(x_dec, p_w, p_b, a_w, b_w)
    assert out_proj.shape == (Bt_, N, Dout)
    assert jnp.allclose(out_proj.astype(jnp.float32), ref_proj,
                        atol=5e-2, rtol=5e-2)

    print("KERNEL_OK")
</pallas_src>

<mosaic_0001>
module attributes {stable_mosaic.version = 11 : i64} {
  func.func @_lora_linear_kernel(%arg0: i32, %arg1: i32, %arg2: memref<128x32xbf16, #tpu.memory_space<vmem>>, %arg3: memref<32x96xbf16, #tpu.memory_space<vmem>>, %arg4: memref<1x96xf32, #tpu.memory_space<vmem>>, %arg5: memref<32x8xbf16, #tpu.memory_space<vmem>>, %arg6: memref<8x96xbf16, #tpu.memory_space<vmem>>, %arg7: memref<128x96xbf16, #tpu.memory_space<vmem>>) attributes {dimension_semantics = [#tpu.dimension_semantics<arbitrary>, #tpu.dimension_semantics<parallel>], iteration_bounds = array<i64: 1, 1>, scalar_prefetch = 0 : i64, scratch_operands = 0 : i64, tpu.core_type = #tpu.core_type<tc>, window_params = [{transform_indices = @transform_0, window_bounds = array<i64: 128, 32>}, {transform_indices = @transform_1, window_bounds = array<i64: 32, 96>}, {transform_indices = @transform_2, window_bounds = array<i64: 1, 96>}, {pipeline_mode = #tpu.pipeline_mode<synchronous>, transform_indices = @transform_3, window_bounds = array<i64: 32, 8>}, {transform_indices = @transform_4, window_bounds = array<i64: 8, 96>}, {transform_indices = @transform_5, window_bounds = array<i64: 128, 96>}]} {
    %c0 = arith.constant 0 : index
    %c0_0 = arith.constant 0 : index
    %0 = vector.load %arg2[%c0, %c0_0] : memref<128x32xbf16, #tpu.memory_space<vmem>>, vector<128x32xbf16>
    %c0_1 = arith.constant 0 : index
    %c0_2 = arith.constant 0 : index
    %1 = vector.load %arg3[%c0_1, %c0_2] : memref<32x96xbf16, #tpu.memory_space<vmem>>, vector<32x96xbf16>
    %cst = arith.constant dense<0.000000e+00> : vector<128x96xf32>
    %2 = tpu.matmul %0, %1, %cst {dimension_numbers = #tpu.dot_dimension_numbers<[1], [0], [0], [1], [0, 0, 1, 1], [], []>} : vector<128x32xbf16>, vector<32x96xbf16>, vector<128x96xf32> -> vector<128x96xf32>
    %c0_3 = arith.constant 0 : index
    %c0_4 = arith.constant 0 : index
    %3 = vector.load %arg4[%c0_3, %c0_4] : memref<1x96xf32, #tpu.memory_space<vmem>>, vector<1x96xf32>
    %4 = vector.broadcast %3 : vector<1x96xf32> to vector<128x96xf32>
    %5 = arith.addf %2, %4 : vector<128x96xf32>
    %c0_5 = arith.constant 0 : index
    %c0_6 = arith.constant 0 : index
    %6 = vector.load %arg5[%c0_5, %c0_6] : memref<32x8xbf16, #tpu.memory_space<vmem>>, vector<32x8xbf16>
    %cst_7 = arith.constant dense<0.000000e+00> : vector<128x8xf32>
    %7 = tpu.matmul %0, %6, %cst_7 {dimension_numbers = #tpu.dot_dimension_numbers<[1], [0], [0], [1], [0, 0, 1, 1], [], []>} : vector<128x32xbf16>, vector<32x8xbf16>, vector<128x8xf32> -> vector<128x8xf32>
    %8 = arith.truncf %7 : vector<128x8xf32> to vector<128x8xbf16>
    %c0_8 = arith.constant 0 : index
    %c0_9 = arith.constant 0 : index
    %9 = vector.load %arg6[%c0_8, %c0_9] : memref<8x96xbf16, #tpu.memory_space<vmem>>, vector<8x96xbf16>
    %cst_10 = arith.constant dense<0.000000e+00> : vector<128x96xf32>
    %10 = tpu.matmul %8, %9, %cst_10 {dimension_numbers = #tpu.dot_dimension_numbers<[1], [0], [0], [1], [0, 0, 1, 1], [], []>} : vector<128x8xbf16>, vector<8x96xbf16>, vector<128x96xf32> -> vector<128x96xf32>
    %11 = arith.addf %5, %10 : vector<128x96xf32>
    %12 = arith.truncf %11 : vector<128x96xf32> to vector<128x96xbf16>
    %c0_11 = arith.constant 0 : index
    %c0_12 = arith.constant 0 : index
    %13 = vector.load %arg7[%c0_11, %c0_12] : memref<128x96xbf16, #tpu.memory_space<vmem>>, vector<128x96xbf16>
    tpu.vector_store %arg7[%c0_11, %c0_12], %12 {strides = array<i32>} : memref<128x96xbf16, #tpu.memory_space<vmem>>, vector<128x96xbf16>,
    return
  }
  func.func @transform_0(%arg0: i32, %arg1: i32) -> (i32, i32) {
    %c0_i32 = arith.constant 0 : i32
    %c0_i32_0 = arith.constant 0 : i32
    return %arg1, %c0_i32 : i32, i32
  }
  func.func @transform_1(%arg0: i32, %arg1: i32) -> (i32, i32) {
    %c0_i32 = arith.constant 0 : i32
    %c0_i32_0 = arith.constant 0 : i32
    return %c0_i32, %arg0 : i32, i32
  }
  func.func @transform_2(%arg0: i32, %arg1: i32) -> (i32, i32) {
    %c0_i32 = arith.constant 0 : i32
    %c0_i32_0 = arith.constant 0 : i32
    return %c0_i32, %arg0 : i32, i32
  }
  func.func @transform_3(%arg0: i32, %arg1: i32) -> (i32, i32) {
    %c0_i32 = arith.constant 0 : i32
    %c0_i32_0 = arith.constant 0 : i32
    %c0_i32_1 = arith.constant 0 : i32
    return %c0_i32, %c0_i32_0 : i32, i32
  }
  func.func @transform_4(%arg0: i32, %arg1: i32) -> (i32, i32) {
    %c0_i32 = arith.constant 0 : i32
    %c0_i32_0 = arith.constant 0 : i32
    return %c0_i32, %arg0 : i32, i32
  }
  func.func @transform_5(%arg0: i32, %arg1: i32) -> (i32, i32) {
    %c0_i32 = arith.constant 0 : i32
    return %arg1, %arg0 : i32, i32
  }
}

</mosaic_0001>

<llo_original>
// kernel: tpu_custom_call.1
$region0: #{tpu_custom_call.1}
  #allocation0 [shape = 'u32[]', space=smem, size = 0x4, offset = 0x4, fixed_abs, tag = 'smem constant byte address 0x4 - core index']
  #allocation1 [shape = 'u32[144,128]{1,0:T(1,128)}', space=vmem, size = 0x12000, scoped, tag = 'internal scratch']
  %s0 = inlined_call_operand.vmem [shape: bf16[128,32], index: 0, kind: input, shape index: {}]
  %s1 = inlined_call_operand.vmem [shape: bf16[32,96], index: 1, kind: input, shape index: {}]
  %s2 = inlined_call_operand.vmem [shape: f32[1,96], index: 2, kind: input, shape index: {}]
  %s3 = inlined_call_operand.vmem [shape: bf16[32,8], index: 3, kind: input, shape index: {}]
  %s4 = inlined_call_operand.vmem [shape: bf16[8,96], index: 4, kind: input, shape index: {}]
  %s5 = inlined_call_operand.vmem [shape: bf16[128,96], index: 5, kind: output, shape index: {}]
  %s6 = sld [smem:[#allocation0]]
  $region30: #{tpu_custom_call.1} parent=0
    _
  %s8 = ssub.s32 1, %s6
  %s9 = scalar_select 0, %s8, %s6
  // Predicated region
  $region2: #{tpu_custom_call.1} parent=0 // pred_check
    _
  $region3: #{tpu_custom_call.1} parent=0 // pred_check_branch
    %11 = sbr.rel (0) target = $region5
  $region4: #{tpu_custom_call.1} parent=0 // pred_region
    _
  $region5: #{tpu_custom_call.1} parent=0 // pred_fallthru
    _
  // Predicated region
  $region6: #{tpu_custom_call.1} parent=0 // pred_check
    _
  $region7: #{tpu_custom_call.1} parent=0 // pred_check_branch
    %13 = sbr.rel (0) target = $region9
  $region8: #{tpu_custom_call.1} parent=0 // pred_region
    _
  $region9: #{tpu_custom_call.1} parent=0 // pred_fallthru
    _
  // Predicated region
  $region10: #{tpu_custom_call.1} parent=0 // pred_check
    _
  $region11: #{tpu_custom_call.1} parent=0 // pred_check_branch
    %15 = sbr.rel (0) target = $region13
  $region12: #{tpu_custom_call.1} parent=0 // pred_region
    _
  $region13: #{tpu_custom_call.1} parent=0 // pred_fallthru
    _
  // Predicated region
  $region14: #{tpu_custom_call.1} parent=0 // pred_check
    _
  $region15: #{tpu_custom_call.1} parent=0 // pred_check_branch
    %17 = sbr.rel (0) target = $region17
  $region16: #{tpu_custom_call.1} parent=0 // pred_region
    _
  $region17: #{tpu_custom_call.1} parent=0 // pred_fallthru
    _
  // Predicated region
  $region18: #{tpu_custom_call.1} parent=0 // pred_check
    _
  $region19: #{tpu_custom_call.1} parent=0 // pred_check_branch
    %19 = sbr.rel (0) target = $region21
  $region20: #{tpu_custom_call.1} parent=0 // pred_region
    _
  $region21: #{tpu_custom_call.1} parent=0 // pred_fallthru
    _
  %v21 = vld [vmem:[%s0] sm:$0xf]
  %v22 = vld [vmem:[%s0 + $0x4] sm:$0xf]
  %v23 = vld [vmem:[%s0 + $0x8] sm:$0xf]
  %v24 = vld [vmem:[%s0 + $0xc] sm:$0xf]
  %v25 = vld [vmem:[%s0 + $0x10] sm:$0xf]
  %v26 = vld [vmem:[%s0 + $0x14] sm:$0xf]
  %v27 = vld [vmem:[%s0 + $0x18] sm:$0xf]
  %v28 = vld [vmem:[%s0 + $0x1c] sm:$0xf]
  %v29 = vld [vmem:[%s0 + $0x20] sm:$0xf]
  %v30 = vld [vmem:[%s0 + $0x24] sm:$0xf]
  %v31 = vld [vmem:[%s0 + $0x28] sm:$0xf]
  %v32 = vld [vmem:[%s0 + $0x2c] sm:$0xf]
  %v33 = vld [vmem:[%s0 + $0x30] sm:$0xf]
  %v34 = vld [vmem:[%s0 + $0x34] sm:$0xf]
  %v35 = vld [vmem:[%s0 + $0x38] sm:$0xf]
  %v36 = vld [vmem:[%s0 + $0x3c] sm:$0xf]
  %v37 = vld [vmem:[%s1] sm:$0xf]
  %v38 = vld [vmem:[%s1 + $0x4] sm:$0xf]
  %v39 = vld [vmem:[%s1 + $0x8] sm:$0xf]
  %v40 = vld [vmem:[%s1 + $0xc] sm:$0xf]
  %v41 = vld [vmem:[%s2] sm:$0x1]
  %v43 = vlaneseq
  %v44 = vshrl.u32 %v43, 7
  %v45 = vsub.s32 0, %v44
  %v46 = vrot.slane %v41, %v45
  %v64 = vunpack.c.l.b16 %v21
  %v65 = vunpack.c.l.b16 %v22
  %v66 = vunpack.c.l.b16 %v23
  %v67 = vunpack.c.l.b16 %v24
  %v68 = vunpack.c.l.b16 %v25
  %v69 = vunpack.c.l.b16 %v26
  %v70 = vunpack.c.l.b16 %v27
  %v71 = vunpack.c.l.b16 %v28
  %v72 = vunpack.c.l.b16 %v29
  %v73 = vunpack.c.l.b16 %v30
  %v74 = vunpack.c.l.b16 %v31
  %v75 = vunpack.c.l.b16 %v32
  %v76 = vunpack.c.l.b16 %v33
  %v77 = vunpack.c.l.b16 %v34
  %v78 = vunpack.c.l.b16 %v35
  %v79 = vunpack.c.l.b16 %v36
  %v80 = vpack.c.b16 %v65, %v64
  %v81 = vpack.c.b16 %v67, %v66
  %v82 = vpack.c.b16 %v69, %v68
  %v83 = vpack.c.b16 %v71, %v70
  %v84 = vpack.c.b16 %v73, %v72
  %v85 = vpack.c.b16 %v75, %v74
  %v86 = vpack.c.b16 %v77, %v76
  %v87 = vpack.c.b16 %v79, %v78
  %v92 = vunpack.c.l.b16 %v37
  %v93 = vunpack.c.l.b16 %v38
  %v94 = vunpack.c.l.b16 %v39
  %v95 = vunpack.c.l.b16 %v40
  %v96 = vpack.c.b16 %v93, %v92
  %v97 = vpack.c.b16 %v95, %v94
  %vm100 = vcmask 261120
  %v102 = vsel %vm100, %v80, 0
  %v105 = vsel %vm100, %v81, 0
  %v108 = vsel %vm100, %v82, 0
  %v111 = vsel %vm100, %v83, 0
  %v114 = vsel %vm100, %v84, 0
  %v117 = vsel %vm100, %v85, 0
  %v120 = vsel %vm100, %v86, 0
  %v123 = vsel %vm100, %v87, 0
  %125 = vmatprep.subr.bf16.mxu0 0
  %126 = vmatpush1.bf16.msra.mxu0 %v96
  %127 = vmatprep.subr.bf16.mxu0 0
  %128 = vmatpush1.bf16.msra.mxu0 %v97
  %129 = vmatprep.subr.bf16.mxu0 0
  %130 = vmatpush1.bf16.msra.mxu0 0
  %131 = vmatprep.subr.bf16.mxu0 0
  %132 = vmatpush1.bf16.msra.mxu0 0
  %133 = vmatprep.subr.bf16.mxu0 0
  %134 = vmatpush1.bf16.msra.mxu0 0
  %135 = vmatprep.subr.bf16.mxu0 0
  %136 = vmatpush1.bf16.msra.mxu0 0
  %137 = vmatprep.subr.bf16.mxu0 0
  %138 = vmatpush1.bf16.msra.mxu0 0
  %139 = vmatprep.subr.bf16.mxu0 0
  %140 = vmatpush1.bf16.msra.mxu0 0
  %141 = vmatprep.subr.bf16.mxu0 0
  %142 = vmatpush1.bf16.msra.mxu0 0
  %143 = vmatprep.subr.bf16.mxu0 0
  %144 = vmatpush1.bf16.msra.mxu0 0
  %145 = vmatprep.subr.bf16.mxu0 0
  %146 = vmatpush1.bf16.msra.mxu0 0
  %147 = vmatprep.subr.bf16.mxu0 0
  %148 = vmatpush1.bf16.msra.mxu0 0
  %149 = vmatprep.subr.bf16.mxu0 0
  %150 = vmatpush1.bf16.msra.mxu0 0
  %151 = vmatprep.subr.bf16.mxu0 0
  %152 = vmatpush1.bf16.msra.mxu0 0
  %153 = vmatprep.subr.bf16.mxu0 0
  %154 = vmatpush1.bf16.msra.mxu0 0
  %155 = vmatprep.subr.bf16.mxu0 0
  %156 = vmatpush1.bf16.msra.mxu0 0
  %157 = vmatprep.mubr.bf16.mxu0 0
  %158 = vmatmul.mubr.bf16.gmra.mrb[0].mxu0 %v102
  %v159 = vpop.f32.mrb[0].mxu0
  %v160 = vadd.f32 %v46, %v159
  %v161 = vpop.f32.mrb[0].mxu0
  %v162 = vpop.f32.mrb[0].mxu0
  %v163 = vadd.f32 %v46, %v162
  %v164 = vpop.f32.mrb[0].mxu0
  %165 = vmatprep.mubr.bf16.mxu0 0
  %166 = vmatmul.mubr.bf16.gmra.mrb[0].mxu0 %v105
  %v167 = vpop.f32.mrb[0].mxu0
  %v168 = vadd.f32 %v46, %v167
  %v169 = vpop.f32.mrb[0].mxu0
  %v170 = vpop.f32.mrb[0].mxu0
  %v171 = vadd.f32 %v46, %v170
  %v172 = vpop.f32.mrb[0].mxu0
  %173 = vmatprep.mubr.bf16.mxu0 0
  %174 = vmatmul.mubr.bf16.gmra.mrb[0].mxu0 %v108
  %v175 = vpop.f32.mrb[0].mxu0
  %v176 = vadd.f32 %v46, %v175
  %v177 = vpop.f32.mrb[0].mxu0
  %v178 = vpop.f32.mrb[0].mxu0
  %v179 = vadd.f32 %v46, %v178
  %v180 = vpop.f32.mrb[0].mxu0
  %181 = vmatprep.mubr.bf16.mxu0 0
  %182 = vmatmul.mubr.bf16.gmra.mrb[0].mxu0 %v111
  %v183 = vpop.f32.mrb[0].mxu0
  %v184 = vadd.f32 %v46, %v183
  %v185 = vpop.f32.mrb[0].mxu0
  %v186 = vpop.f32.mrb[0].mxu0
  %v187 = vadd.f32 %v46, %v186
  %v188 = vpop.f32.mrb[0].mxu0
  %189 = vmatprep.mubr.bf16.mxu0 0
  %190 = vmatmul.mubr.bf16.gmra.mrb[0].mxu0 %v114
  %v191 = vpop.f32.mrb[0].mxu0
  %v192 = vadd.f32 %v46, %v191
  %v193 = vpop.f32.mrb[0].mxu0
  %v194 = vpop.f32.mrb[0].mxu0
  %v195 = vadd.f32 %v46, %v194
  %v196 = vpop.f32.mrb[0].mxu0
  %197 = vmatprep.mubr.bf16.mxu0 0
  %198 = vmatmul.mubr.bf16.gmra.mrb[0].mxu0 %v117
  %v199 = vpop.f32.mrb[0].mxu0
  %v200 = vadd.f32 %v46, %v199
  %v201 = vpop.f32.mrb[0].mxu0
  %v202 = vpop.f32.mrb[0].mxu0
  %v203 = vadd.f32 %v46, %v202
  %v204 = vpop.f32.mrb[0].mxu0
  %205 = vmatprep.mubr.bf16.mxu0 0
  %206 = vmatmul.mubr.bf16.gmra.mrb[0].mxu0 %v120
  %v207 = vpop.f32.mrb[0].mxu0
  %v208 = vadd.f32 %v46, %v207
  %v209 = vpop.f32.mrb[0].mxu0
  %v210 = vpop.f32.mrb[0].mxu0
  %v211 = vadd.f32 %v46, %v210
  %v212 = vpop.f32.mrb[0].mxu0
  %213 = vmatprep.mubr.bf16.mxu0 0
  %214 = vmatmul.mubr.bf16.gmra.mrb[0].mxu0 %v123
  %v215 = vpop.f32.mrb[0].mxu0
  %v216 = vadd.f32 %v46, %v215
  %v217 = vpop.f32.mrb[0].mxu0
  %v218 = vpop.f32.mrb[0].mxu0
  %v219 = vadd.f32 %v46, %v218
  %v220 = vpop.f32.mrb[0].mxu0
  %221 = vdwg.mxu0
  %v222 = vld [vmem:[%s3] sm:$0xf]
  %v223 = vld [vmem:[%s3 + $0x4] sm:$0xf]
  %v224 = vld [vmem:[%s3 + $0x8] sm:$0xf]
  %v225 = vld [vmem:[%s3 + $0xc] sm:$0xf]
  %v230 = vunpack.c.l.b16 %v222
  %v231 = vunpack.c.l.b16 %v223
  %v232 = vunpack.c.l.b16 %v224
  %v233 = vunpack.c.l.b16 %v225
  %v234 = vpack.c.b16 %v231, %v230
  %v235 = vpack.c.b16 %v233, %v232
  %238 = vmatprep.subr.bf16.mxu0 0
  %239 = vmatpush1.bf16.msra.mxu0 %v234
  %240 = vmatprep.subr.bf16.mxu0 0
  %241 = vmatpush1.bf16.msra.mxu0 %v235
  %242 = vmatprep.subr.bf16.mxu0 0
  %243 = vmatpush1.bf16.msra.mxu0 0
  %244 = vmatprep.subr.bf16.mxu0 0
  %245 = vmatpush1.bf16.msra.mxu0 0
  %246 = vmatprep.subr.bf16.mxu0 0
  %247 = vmatpush1.bf16.msra.mxu0 0
  %248 = vmatprep.subr.bf16.mxu0 0
  %249 = vmatpush1.bf16.msra.mxu0 0
  %250 = vmatprep.subr.bf16.mxu0 0
  %251 = vmatpush1.bf16.msra.mxu0 0
  %252 = vmatprep.subr.bf16.mxu0 0
  %253 = vmatpush1.bf16.msra.mxu0 0
  %254 = vmatprep.subr.bf16.mxu0 0
  %255 = vmatpush1.bf16.msra.mxu0 0
  %256 = vmatprep.subr.bf16.mxu0 0
  %257 = vmatpush1.bf16.msra.mxu0 0
  %258 = vmatprep.subr.bf16.mxu0 0
  %259 = vmatpush1.bf16.msra.mxu0 0
  %260 = vmatprep.subr.bf16.mxu0 0
  %261 = vmatpush1.bf16.msra.mxu0 0
  %262 = vmatprep.subr.bf16.mxu0 0
  %263 = vmatpush1.bf16.msra.mxu0 0
  %264 = vmatprep.subr.bf16.mxu0 0
  %265 = vmatpush1.bf16.msra.mxu0 0
  %266 = vmatprep.subr.bf16.mxu0 0
  %267 = vmatpush1.bf16.msra.mxu0 0
  %268 = vmatprep.subr.bf16.mxu0 0
  %269 = vmatpush1.bf16.msra.mxu0 0
  %270 = vmatprep.mubr.bf16.mxu0 0
  %271 = vmatmul.mubr.bf16.gmra.mrb[0].mxu0 %v102
  %v272 = vpop.f32.mrb[0].mxu0
  %v273 = vadd.f32 0.0, %v272
  %v274 = vpop.f32.mrb[0].mxu0
  %v275 = vpop.f32.mrb[0].mxu0
  %v276 = vadd.f32 0.0, %v275
  %v277 = vpop.f32.mrb[0].mxu0
  %278 = vmatprep.mubr.bf16.mxu0 0
  %279 = vmatmul.mubr.bf16.gmra.mrb[0].mxu0 %v105
  %v280 = vpop.f32.mrb[0].mxu0
  %v281 = vadd.f32 0.0, %v280
  %v282 = vpop.f32.mrb[0].mxu0
  %v283 = vpop.f32.mrb[0].mxu0
  %v284 = vadd.f32 0.0, %v283
  %v285 = vpop.f32.mrb[0].mxu0
  %286 = vmatprep.mubr.bf16.mxu0 0
  %287 = vmatmul.mubr.bf16.gmra.mrb[0].mxu0 %v108
  %v288 = vpop.f32.mrb[0].mxu0
  %v289 = vadd.f32 0.0, %v288
  %v290 = vpop.f32.mrb[0].mxu0
  %v291 = vpop.f32.mrb[0].mxu0
  %v292 = vadd.f32 0.0, %v291
  %v293 = vpop.f32.mrb[0].mxu0
  %294 = vmatprep.mubr.bf16.mxu0 0
  %295 = vmatmul.mubr.bf16.gmra.mrb[0].mxu0 %v111
  %v296 = vpop.f32.mrb[0].mxu0
  %v297 = vadd.f32 0.0, %v296
  %v298 = vpop.f32.mrb[0].mxu0
  %v299 = vpop.f32.mrb[0].mxu0
  %v300 = vadd.f32 0.0, %v299
  %v301 = vpop.f32.mrb[0].mxu0
  %302 = vmatprep.mubr.bf16.mxu0 0
  %303 = vmatmul.mubr.bf16.gmra.mrb[0].mxu0 %v114
  %v304 = vpop.f32.mrb[0].mxu0
  %v305 = vadd.f32 0.0, %v304
  %v306 = vpop.f32.mrb[0].mxu0
  %v307 = vpop.f32.mrb[0].mxu0
  %v308 = vadd.f32 0.0, %v307
  %v309 = vpop.f32.mrb[0].mxu0
  %310 = vmatprep.mubr.bf16.mxu0 0
  %311 = vmatmul.mubr.bf16.gmra.mrb[0].mxu0 %v117
  %v312 = vpop.f32.mrb[0].mxu0
  %v313 = vadd.f32 0.0, %v312
  %v314 = vpop.f32.mrb[0].mxu0
  %v315 = vpop.f32.mrb[0].mxu0
  %v316 = vadd.f32 0.0, %v315
  %v317 = vpop.f32.mrb[0].mxu0
  %318 = vmatprep.mubr.bf16.mxu0 0
  %319 = vmatmul.mubr.bf16.gmra.mrb[0].mxu0 %v120
  %v320 = vpop.f32.mrb[0].mxu0
  %v321 = vadd.f32 0.0, %v320
  %v322 = vpop.f32.mrb[0].mxu0
  %v323 = vpop.f32.mrb[0].mxu0
  %v324 = vadd.f32 0.0, %v323
  %v325 = vpop.f32.mrb[0].mxu0
  %326 = vmatprep.mubr.bf16.mxu0 0
  %327 = vmatmul.mubr.bf16.gmra.mrb[0].mxu0 %v123
  %v328 = vpop.f32.mrb[0].mxu0
  %v329 = vadd.f32 0.0, %v328
  %v330 = vpop.f32.mrb[0].mxu0
  %v331 = vpop.f32.mrb[0].mxu0
  %v332 = vadd.f32 0.0, %v331
  %v333 = vpop.f32.mrb[0].mxu0
  %334 = vdwg.mxu0
  %v335 = vpack.c.bf16 %v276, %v273
  %v336 = vpack.c.bf16 %v284, %v281
  %v337 = vpack.c.bf16 %v292, %v289
  %v338 = vpack.c.bf16 %v300, %v297
  %v339 = vpack.c.bf16 %v308, %v305
  %v340 = vpack.c.bf16 %v316, %v313
  %v341 = vpack.c.bf16 %v324, %v321
  %v342 = vpack.c.bf16 %v332, %v329
  %v343 = vld [vmem:[%s4] sm:$0xf]
  %vm344 = vcmask 64512
  %v346 = vsel %vm344, %v335, 0
  %v349 = vsel %vm344, %v336, 0
  %v352 = vsel %vm344, %v337, 0
  %v355 = vsel %vm344, %v338, 0
  %v358 = vsel %vm344, %v339, 0
  %v361 = vsel %vm344, %v340, 0
  %v364 = vsel %vm344, %v341, 0
  %v367 = vsel %vm344, %v342, 0
  %vm369 = vcmask 1043456
  %v371 = vsel %vm369, %v343, 0
  %373 = vmatprep.subr.bf16.mxu0 0
  %374 = vmatpush1.bf16.msra.mxu0 %v371
  %375 = vmatprep.subr.bf16.mxu0 0
  %376 = vmatpush1.bf16.msra.mxu0 0
  %377 = vmatprep.subr.bf16.mxu0 0
  %378 = vmatpush1.bf16.msra.mxu0 0
  %379 = vmatprep.subr.bf16.mxu0 0
  %380 = vmatpush1.bf16.msra.mxu0 0
  %381 = vmatprep.subr.bf16.mxu0 0
  %382 = vmatpush1.bf16.msra.mxu0 0
  %383 = vmatprep.subr.bf16.mxu0 0
  %384 = vmatpush1.bf16.msra.mxu0 0
  %385 = vmatprep.subr.bf16.mxu0 0
  %386 = vmatpush1.bf16.msra.mxu0 0
  %387 = vmatprep.subr.bf16.mxu0 0
  %388 = vmatpush1.bf16.msra.mxu0 0
  %389 = vmatprep.subr.bf16.mxu0 0
  %390 = vmatpush1.bf16.msra.mxu0 0
  %391 = vmatprep.subr.bf16.mxu0 0
  %392 = vmatpush1.bf16.msra.mxu0 0
  %393 = vmatprep.subr.bf16.mxu0 0
  %394 = vmatpush1.bf16.msra.mxu0 0
  %395 = vmatprep.subr.bf16.mxu0 0
  %396 = vmatpush1.bf16.msra.mxu0 0
  %397 = vmatprep.subr.bf16.mxu0 0
  %398 = vmatpush1.bf16.msra.mxu0 0
  %399 = vmatprep.subr.bf16.mxu0 0
  %400 = vmatpush1.bf16.msra.mxu0 0
  %401 = vmatprep.subr.bf16.mxu0 0
  %402 = vmatpush1.bf16.msra.mxu0 0
  %403 = vmatprep.subr.bf16.mxu0 0
  %404 = vmatpush1.bf16.msra.mxu0 0
  %405 = vmatprep.mubr.bf16.mxu0 0
  %406 = vmatmul.mubr.bf16.gmra.mrb[0].mxu0 %v346
  %v407 = vpop.f32.mrb[0].mxu0
  %v408 = vadd.f32 0.0, %v407
  %v409 = vpop.f32.mrb[0].mxu0
  %v410 = vpop.f32.mrb[0].mxu0
  %v411 = vadd.f32 0.0, %v410
  %v412 = vpop.f32.mrb[0].mxu0
  %413 = vmatprep.mubr.bf16.mxu0 0
  %414 = vmatmul.mubr.bf16.gmra.mrb[0].mxu0 %v349
  %v415 = vpop.f32.mrb[0].mxu0
  %v416 = vadd.f32 0.0, %v415
  %v417 = vpop.f32.mrb[0].mxu0
  %v418 = vpop.f32.mrb[0].mxu0
  %v419 = vadd.f32 0.0, %v418
  %v420 = vpop.f32.mrb[0].mxu0
  %421 = vmatprep.mubr.bf16.mxu0 0
  %422 = vmatmul.mubr.bf16.gmra.mrb[0].mxu0 %v352
  %v423 = vpop.f32.mrb[0].mxu0
  %v424 = vadd.f32 0.0, %v423
  %v425 = vpop.f32.mrb[0].mxu0
  %v426 = vpop.f32.mrb[0].mxu0
  %v427 = vadd.f32 0.0, %v426
  %v428 = vpop.f32.mrb[0].mxu0
  %429 = vmatprep.mubr.bf16.mxu0 0
  %430 = vmatmul.mubr.bf16.gmra.mrb[0].mxu0 %v355
  %v431 = vpop.f32.mrb[0].mxu0
  %v432 = vadd.f32 0.0, %v431
  %v433 = vpop.f32.mrb[0].mxu0
  %v434 = vpop.f32.mrb[0].mxu0
  %v435 = vadd.f32 0.0, %v434
  %v436 = vpop.f32.mrb[0].mxu0
  %437 = vmatprep.mubr.bf16.mxu0 0
  %438 = vmatmul.mubr.bf16.gmra.mrb[0].mxu0 %v358
  %v439 = vpop.f32.mrb[0].mxu0
  %v440 = vadd.f32 0.0, %v439
  %v441 = vpop.f32.mrb[0].mxu0
  %v442 = vpop.f32.mrb[0].mxu0
  %v443 = vadd.f32 0.0, %v442
  %v444 = vpop.f32.mrb[0].mxu0
  %445 = vmatprep.mubr.bf16.mxu0 0
  %446 = vmatmul.mubr.bf16.gmra.mrb[0].mxu0 %v361
  %v447 = vpop.f32.mrb[0].mxu0
  %v448 = vadd.f32 0.0, %v447
  %v449 = vpop.f32.mrb[0].mxu0
  %v450 = vpop.f32.mrb[0].mxu0
  %v451 = vadd.f32 0.0, %v450
  %v452 = vpop.f32.mrb[0].mxu0
  %453 = vmatprep.mubr.bf16.mxu0 0
  %454 = vmatmul.mubr.bf16.gmra.mrb[0].mxu0 %v364
  %v455 = vpop.f32.mrb[0].mxu0
  %v456 = vadd.f32 0.0, %v455
  %v457 = vpop.f32.mrb[0].mxu0
  %v458 = vpop.f32.mrb[0].mxu0
  %v459 = vadd.f32 0.0, %v458
  %v460 = vpop.f32.mrb[0].mxu0
  %461 = vmatprep.mubr.bf16.mxu0 0
  %462 = vmatmul.mubr.bf16.gmra.mrb[0].mxu0 %v367
  %v463 = vpop.f32.mrb[0].mxu0
  %v464 = vadd.f32 0.0, %v463
  %v465 = vpop.f32.mrb[0].mxu0
  %v466 = vpop.f32.mrb[0].mxu0
  %v467 = vadd.f32 0.0, %v466
  %v468 = vpop.f32.mrb[0].mxu0
  %469 = vdwg.mxu0
  %v470 = vadd.f32 %v160, %v408
  %v471 = vadd.f32 %v163, %v411
  %v472 = vadd.f32 %v168, %v416
  %v473 = vadd.f32 %v171, %v419
  %v474 = vadd.f32 %v176, %v424
  %v475 = vadd.f32 %v179, %v427
  %v476 = vadd.f32 %v184, %v432
  %v477 = vadd.f32 %v187, %v435
  %v478 = vadd.f32 %v192, %v440
  %v479 = vadd.f32 %v195, %v443
  %v480 = vadd.f32 %v200, %v448
  %v481 = vadd.f32 %v203, %v451
  %v482 = vadd.f32 %v208, %v456
  %v483 = vadd.f32 %v211, %v459
  %v484 = vadd.f32 %v216, %v464
  %v485 = vadd.f32 %v219, %v467
  %v486 = vpack.c.bf16 %v471, %v470
  %v487 = vpack.c.bf16 %v473, %v472
  %v488 = vpack.c.bf16 %v475, %v474
  %v489 = vpack.c.bf16 %v477, %v476
  %v490 = vpack.c.bf16 %v479, %v478
  %v491 = vpack.c.bf16 %v481, %v480
  %v492 = vpack.c.bf16 %v483, %v482
  %v493 = vpack.c.bf16 %v485, %v484
  %v502 = vunpack.c.l.b16 %v486
  %v503 = vunpack.c.h.b16 %v486
  %v504 = vunpack.c.l.b16 %v487
  %v505 = vunpack.c.h.b16 %v487
  %v506 = vunpack.c.l.b16 %v488
  %v507 = vunpack.c.h.b16 %v488
  %v508 = vunpack.c.l.b16 %v489
  %v509 = vunpack.c.h.b16 %v489
  %v510 = vunpack.c.l.b16 %v490
  %v511 = vunpack.c.h.b16 %v490
  %v512 = vunpack.c.l.b16 %v491
  %v513 = vunpack.c.h.b16 %v491
  %v514 = vunpack.c.l.b16 %v492
  %v515 = vunpack.c.h.b16 %v492
  %v516 = vunpack.c.l.b16 %v493
  %v517 = vunpack.c.h.b16 %v493
  %v518 = vpack.c.b16 %v502, %v502
  %v519 = vpack.c.b16 %v503, %v503
  %v520 = vpack.c.b16 %v504, %v504
  %v521 = vpack.c.b16 %v505, %v505
  %v522 = vpack.c.b16 %v506, %v506
  %v523 = vpack.c.b16 %v507, %v507
  %v524 = vpack.c.b16 %v508, %v508
  %v525 = vpack.c.b16 %v509, %v509
  %v526 = vpack.c.b16 %v510, %v510
  %v527 = vpack.c.b16 %v511, %v511
  %v528 = vpack.c.b16 %v512, %v512
  %v529 = vpack.c.b16 %v513, %v513
  %v530 = vpack.c.b16 %v514, %v514
  %v531 = vpack.c.b16 %v515, %v515
  %v532 = vpack.c.b16 %v516, %v516
  %v533 = vpack.c.b16 %v517, %v517
  %vm550 = vcmask 781312
  %551 = vst.msk [vmem:[%s5] sm:$0xf] %vm550, %v518
  %552 = vst.msk [vmem:[%s5 + $0x4] sm:$0xf] %vm550, %v519
  %553 = vst.msk [vmem:[%s5 + $0x8] sm:$0xf] %vm550, %v520
  %554 = vst.msk [vmem:[%s5 + $0xc] sm:$0xf] %vm550, %v521
  %555 = vst.msk [vmem:[%s5 + $0x10] sm:$0xf] %vm550, %v522
  %556 = vst.msk [vmem:[%s5 + $0x14] sm:$0xf] %vm550, %v523
  %557 = vst.msk [vmem:[%s5 + $0x18] sm:$0xf] %vm550, %v524
  %558 = vst.msk [vmem:[%s5 + $0x1c] sm:$0xf] %vm550, %v525
  %559 = vst.msk [vmem:[%s5 + $0x20] sm:$0xf] %vm550, %v526
  %560 = vst.msk [vmem:[%s5 + $0x24] sm:$0xf] %vm550, %v527
  %561 = vst.msk [vmem:[%s5 + $0x28] sm:$0xf] %vm550, %v528
  %562 = vst.msk [vmem:[%s5 + $0x2c] sm:$0xf] %vm550, %v529
  %563 = vst.msk [vmem:[%s5 + $0x30] sm:$0xf] %vm550, %v530
  %564 = vst.msk [vmem:[%s5 + $0x34] sm:$0xf] %vm550, %v531
  %565 = vst.msk [vmem:[%s5 + $0x38] sm:$0xf] %vm550, %v532
  %566 = vst.msk [vmem:[%s5 + $0x3c] sm:$0xf] %vm550, %v533
  // Predicated region
  $region22: #{tpu_custom_call.1} parent=0 // pred_check
    _
  $region23: #{tpu_custom_call.1} parent=0 // pred_check_branch
    %568 = sbr.rel (0) target = $region25
  $region24: #{tpu_custom_call.1} parent=0 // pred_region
    _
  $region25: #{tpu_custom_call.1} parent=0 // pred_fallthru
    _
  // Predicated region
  $region26: #{tpu_custom_call.1} parent=0 // pred_check
    _
  $region27: #{tpu_custom_call.1} parent=0 // pred_check_branch
    %570 = sbr.rel (0) target = $region29
  $region28: #{tpu_custom_call.1} parent=0 // pred_region
    _
  $region29: #{tpu_custom_call.1} parent=0 // pred_fallthru
    _

</llo_original>
